<compile_context>
chip_gen: v7x
topology: tpu7x:2x2x1
jax: 0.10.0
libtpu: 0.0.40
codegen_flags: <defaults>
</compile_context>

<pallas_src>
import functools
import math

import jax
import jax.numpy as jnp
from jax.experimental import pallas as pl
from jax.experimental.pallas import tpu as pltpu

LN_EPS = 1e-12           # BertConfig.layer_norm_eps
_MiB = 1024 * 1024


# ------------------------- hardware detection ------------------------------

def _detect_hw():
    kind = ""
    try:
        kind = jax.devices()[0].device_kind.lower()
    except Exception:
        pass
    vmem_cap = None
    try:
        vmem_cap = int(getattr(pltpu.get_tpu_info(), "vmem_capacity_bytes"))
    except Exception:
        vmem_cap = None
    if not vmem_cap:
        if "v7" in kind:
            vmem_cap = 64 * _MiB
        elif kind:
            vmem_cap = 128 * _MiB
        else:
            vmem_cap = 64 * _MiB          # unknown: be conservative
    # bf16 VPU/EUP exists on v6e/v7x; not on v5e and older.
    bf16_fast = bool(kind) and not any(("v%d" % n) in kind for n in (2, 3, 4, 5))
    return vmem_cap, bf16_fast, kind


_VMEM_CAP, _BF16_FAST, _DEVICE_KIND = _detect_hw()

if _VMEM_CAP >= 96 * _MiB:                # v5e / v6e: 128 MiB physical VMEM
    VMEM_LIMIT = 100 * _MiB
    ROW_TILE = 512                        # rows per tile for row-tiled kernels
else:                                     # v7x: 64 MiB physical -> headroom
    VMEM_LIMIT = max(32 * _MiB, min(52 * _MiB, int(_VMEM_CAP * 0.8)))
    ROW_TILE = 256
TQ_TILE = 256                             # query rows per attention grid step


def _cparams(semantics=None):
    return pltpu.CompilerParams(dimension_semantics=semantics,
                                vmem_limit_bytes=VMEM_LIMIT)


# ---------------- single-buffered resident-weight feature probe ------------

_WEIGHT_PIPELINE_MODE = "unset"


def _probe_single_buffer():
    """Feature-detect pipeline_mode=pl.Buffered(1) for VMEM-resident weights.

    Constant-index_map inputs are double-buffered by default; on v7x that
    wastes ~10 MB for the resident FFN weights.  Probe once and fall back to
    default buffering if the API / lowering does not support it.
    """
    buffered_cls = getattr(pl, "Buffered", None)
    if buffered_cls is None:
        return None
    try:
        mode = buffered_cls(1)
    except TypeError:
        try:
            mode = buffered_cls(buffer_count=1)
        except Exception:
            return None
    except Exception:
        return None
    try:
        w_spec = pl.BlockSpec((8, 128), lambda i: (0, 0), pipeline_mode=mode)
    except TypeError:
        return None

    def _probe_kernel(x_ref, w_ref, o_ref):
        o_ref[...] = x_ref[...] + w_ref[...]

    try:
        out = pl.pallas_call(
            _probe_kernel,
            out_shape=jax.ShapeDtypeStruct((16, 128), jnp.float32),
            grid=(2,),
            in_specs=[pl.BlockSpec((8, 128), lambda i: (i, 0)), w_spec],
            out_specs=pl.BlockSpec((8, 128), lambda i: (i, 0)),
            compiler_params=_cparams(("arbitrary",)),
        )(jnp.zeros((16, 128), jnp.float32), jnp.ones((8, 128), jnp.float32))
        jax.block_until_ready(out)
        if not bool(jnp.all(out == 1.0)):
            return None
        return mode
    except Exception:
        return None


def _weight_pipeline_mode():
    global _WEIGHT_PIPELINE_MODE
    if _WEIGHT_PIPELINE_MODE == "unset":
        _WEIGHT_PIPELINE_MODE = _probe_single_buffer()
    return _WEIGHT_PIPELINE_MODE


def _const_spec(shape):
    """Weight / bias / LN-param spec: VMEM resident across all grid steps."""
    idx = lambda *args: (0,) * len(shape)
    mode = _weight_pipeline_mode()
    if mode is not None:
        return pl.BlockSpec(shape, idx, pipeline_mode=mode)
    return pl.BlockSpec(shape, idx)


# ----------------------------- math helpers --------------------------------

def _layernorm(x, gamma, beta):
    mu = jnp.mean(x, axis=-1, keepdims=True)
    var = jnp.mean((x - mu) ** 2, axis=-1, keepdims=True)
    return (x - mu) * jax.lax.rsqrt(var + LN_EPS) * gamma + beta


def _gelu(x):
    # TODO(synk): bert-base-cased uses erf-based GELU; tanh approximation is
    # used here for guaranteed Mosaic lowering (small numerical drift).
    c = math.sqrt(2.0 / math.pi)
    return 0.5 * x * (1.0 + jnp.tanh(c * (x + 0.044715 * (x ** 3))))


def _row_tile(rows):
    return ROW_TILE if rows >= ROW_TILE else rows


# ------------------------------- kernels ------------------------------------

def layernorm_kernel(x_ref, g_ref, b_ref, o_ref):
    o_ref[...] = _layernorm(x_ref[...], g_ref[...], b_ref[...])


def qkv_proj_kernel(x_ref, w_ref, b_ref, o_ref):
    x = x_ref[...].astype(jnp.bfloat16)
    acc = jnp.dot(x, w_ref[...], preferred_element_type=jnp.float32) + b_ref[...]
    o_ref[...] = acc.astype(o_ref.dtype)          # bf16 handoff


def attention_kernel(q_ref, k_ref, v_ref, bias_ref, o_ref, *,
                     num_heads, head_dim, scale, exp_dtype):
    """One (batch element, q row-tile) per grid step.

    q_ref : (tq, H)  bf16  -- Q section rows of this batch/q-tile
    k_ref : (S,  H)  bf16  -- K section, full sequence of this batch element
    v_ref : (S,  H)  bf16
    bias  : (1, 1, S) f32  -- additive attention-mask bias for this batch elem
    o_ref : (tq, H)  bf16  -- context, already in flat [rows, H] layout
    """
    bias = bias_ref[...][0]                       # (1, S) f32
    ctx_heads = []
    for h in range(num_heads):                    # static unroll over heads
        sl = slice(h * head_dim, (h + 1) * head_dim)
        qh = q_ref[:, sl]                         # (tq, hd) bf16
        kh = k_ref[:, sl]                         # (S,  hd) bf16
        vh = v_ref[:, sl]                         # (S,  hd) bf16
        s = jax.lax.dot_general(                  # (tq, S) f32 scores
            qh, kh, (((1,), (1,)), ((), ())),
            preferred_element_type=jnp.float32) * scale + bias
        m = jnp.max(s, axis=-1, keepdims=True)
        p = jnp.exp((s - m).astype(exp_dtype))    # bf16 exp on v6e/v7x
        l = jnp.sum(p.astype(jnp.float32), axis=-1, keepdims=True)
        ctx = jnp.dot(p.astype(jnp.bfloat16), vh,
                      preferred_element_type=jnp.float32)
        ctx_heads.append(ctx / l)                 # exact normalization
    o_ref[...] = jnp.concatenate(ctx_heads, axis=-1).astype(o_ref.dtype)


def post_attn_ffn_kernel(ctx_ref, resid_ref, wo_ref, bo_ref, g1_ref, be1_ref,
                         w1_ref, b1_ref, w2_ref, b2_ref, g2_ref, be2_ref,
                         o_ref, *, gelu_dtype):
    """Fused: W_o projection + residual LN + FFN + residual LN per row tile."""
    attn = jnp.dot(ctx_ref[...], wo_ref[...],
                   preferred_element_type=jnp.float32) + bo_ref[...]
    h1 = _layernorm(resid_ref[...] + attn, g1_ref[...], be1_ref[...])
    h = jnp.dot(h1.astype(jnp.bfloat16), w1_ref[...],
                preferred_element_type=jnp.float32) + b1_ref[...]
    h = _gelu(h.astype(gelu_dtype))
    y = jnp.dot(h.astype(jnp.bfloat16), w2_ref[...],
                preferred_element_type=jnp.float32) + b2_ref[...]
    o_ref[...] = _layernorm(h1 + y, g2_ref[...], be2_ref[...])


def classifier_kernel(x_ref, w_ref, b_ref, o_ref):
    o_ref[...] = (jnp.dot(x_ref[...].astype(jnp.bfloat16), w_ref[...],
                          preferred_element_type=jnp.float32) + b_ref[...])


# ------------------------------- wrappers ------------------------------------

def pallas_layernorm(x, gamma, beta):
    rows, H = x.shape
    tm = _row_tile(rows)
    return pl.pallas_call(
        layernorm_kernel,
        out_shape=jax.ShapeDtypeStruct((rows, H), jnp.float32),
        grid=(pl.cdiv(rows, tm),),
        in_specs=[pl.BlockSpec((tm, H), lambda i: (i, 0)),
                  _const_spec((1, H)), _const_spec((1, H))],
        out_specs=pl.BlockSpec((tm, H), lambda i: (i, 0)),
        compiler_params=_cparams(("parallel",)),
    )(x, gamma, beta)


def pallas_qkv_proj(x, w_qkv, b_qkv):
    rows, H = x.shape
    H3 = w_qkv.shape[1]
    tm = _row_tile(rows)
    return pl.pallas_call(
        qkv_proj_kernel,
        out_shape=jax.ShapeDtypeStruct((rows, H3), jnp.bfloat16),
        grid=(pl.cdiv(rows, tm),),
        in_specs=[pl.BlockSpec((tm, H), lambda i: (i, 0)),
                  _const_spec((H, H3)), _const_spec((1, H3))],
        out_specs=pl.BlockSpec((tm, H3), lambda i: (i, 0)),
        compiler_params=_cparams(("parallel",)),
    )(x, w_qkv, b_qkv)


def pallas_attention(qkv, bias, B, S, H, num_heads):
    """qkv: [B*S, 3H] bf16 (fused Wq|Wk|Wv output); bias: [B, 1, S] f32."""
    rows = qkv.shape[0]
    hd = H // num_heads
    assert H % 128 == 0, "attention kernel assumes hidden size % 128 == 0"
    assert S % 8 == 0, "attention kernel assumes sequence length % 8 == 0"
    tq = TQ_TILE if (S > TQ_TILE and S % TQ_TILE == 0) else S
    n_q = S // tq
    row_map = lambda b, qi: (b * n_q + qi, 0)         # Q section: lane block 0
    kern = functools.partial(
        attention_kernel, num_heads=num_heads, head_dim=hd,
        scale=1.0 / math.sqrt(hd),
        exp_dtype=jnp.bfloat16 if _BF16_FAST else jnp.float32)
    return pl.pallas_call(
        kern,
        out_shape=jax.ShapeDtypeStruct((rows, H), jnp.bfloat16),
        grid=(B, n_q),
        in_specs=[pl.BlockSpec((tq, H), row_map),                   # Q rows
                  pl.BlockSpec((S, H), lambda b, qi: (b, 1)),       # K section
                  pl.BlockSpec((S, H), lambda b, qi: (b, 2)),       # V section
                  pl.BlockSpec((1, 1, S), lambda b, qi: (b, 0, 0))],
        out_specs=pl.BlockSpec((tq, H), row_map),
        compiler_params=_cparams(("parallel", "parallel")),
    )(qkv, qkv, qkv, bias)


def pallas_post_attn_ffn(ctx, resid, p):
    rows, H = resid.shape
    inter = p['w1'].shape[1]
    tm = _row_tile(rows)
    kern = functools.partial(
        post_attn_ffn_kernel,
        gelu_dtype=jnp.bfloat16 if _BF16_FAST else jnp.float32)
    return pl.pallas_call(
        kern,
        out_shape=jax.ShapeDtypeStruct((rows, H), jnp.float32),
        grid=(pl.cdiv(rows, tm),),
        in_specs=[pl.BlockSpec((tm, H), lambda i: (i, 0)),   # ctx (bf16)
                  pl.BlockSpec((tm, H), lambda i: (i, 0)),   # residual (f32)
                  _const_spec((H, H)), _const_spec((1, H)),
                  _const_spec((1, H)), _const_spec((1, H)),
                  _const_spec((H, inter)), _const_spec((1, inter)),
                  _const_spec((inter, H)), _const_spec((1, H)),
                  _const_spec((1, H)), _const_spec((1, H))],
        out_specs=pl.BlockSpec((tm, H), lambda i: (i, 0)),
        compiler_params=_cparams(("parallel",)),
    )(ctx, resid, p['w_o'], p['b_o'], p['ln1_g'], p['ln1_b'],
      p['w1'], p['b1'], p['w2'], p['b2'], p['ln2_g'], p['ln2_b'])


def pallas_classifier(x, w_pad, b_pad):
    B = x.shape[0]
    L_pad = w_pad.shape[1]
    vmem = pl.BlockSpec(memory_space=pltpu.MemorySpace.VMEM)
    return pl.pallas_call(
        classifier_kernel,
        out_shape=jax.ShapeDtypeStruct((B, L_pad), jnp.float32),
        in_specs=[vmem, vmem, vmem],
        out_specs=vmem,
        compiler_params=_cparams(),
    )(x, w_pad, b_pad)


# ------------------------- parameter init / forward --------------------------

def init_params(key, num_tokens, num_labels, hidden, num_layers,
                intermediate, max_pos):
    std = 0.02
    keys = iter(jax.random.split(key, 64))

    def nrm(shape, dtype=jnp.float32):
        return (std * jax.random.normal(next(keys), shape)).astype(dtype)

    ones = lambda s: jnp.ones(s, jnp.float32)
    zeros = lambda s: jnp.zeros(s, jnp.float32)

    num_labels_pad = int(pl.cdiv(num_labels, 128)) * 128
    cls_w = jnp.zeros((hidden, num_labels_pad), jnp.float32)
    cls_w = cls_w.at[:, :num_labels].set(nrm((hidden, num_labels)))

    params = {
        'word_emb': nrm((num_tokens, hidden)),
        'pos_emb': nrm((max_pos, hidden)),
        'type_emb': nrm((2, hidden)),
        'emb_ln_g': ones((1, hidden)),
        'emb_ln_b': zeros((1, hidden)),
        'layers': [],
        'cls_w': cls_w.astype(jnp.bfloat16),     # lane-dense padded classifier
        'cls_b': zeros((1, num_labels_pad)),
        'num_labels': num_labels,
    }
    for _ in range(num_layers):
        layer = {
            'w_qkv': nrm((hidden, 3 * hidden), jnp.bfloat16),  # fused Wq|Wk|Wv
            'b_qkv': zeros((1, 3 * hidden)),
            'w_o': nrm((hidden, hidden), jnp.bfloat16),
            'b_o': zeros((1, hidden)),
            'ln1_g': ones((1, hidden)), 'ln1_b': zeros((1, hidden)),
            'w1': nrm((hidden, intermediate), jnp.bfloat16),
            'b1': zeros((1, intermediate)),
            'w2': nrm((intermediate, hidden), jnp.bfloat16),
            'b2': zeros((1, hidden)),
            'ln2_g': ones((1, hidden)), 'ln2_b': zeros((1, hidden)),
        }
        params['layers'].append(layer)
    return params


def encoder_layer(x_flat, bias, p, B, S, num_heads):
    rows, H = x_flat.shape
    qkv = pallas_qkv_proj(x_flat, p['w_qkv'], p['b_qkv'])     # [rows, 3H] bf16
    ctx = pallas_attention(qkv, bias, B, S, H, num_heads)     # [rows,  H] bf16
    return pallas_post_attn_ffn(ctx, x_flat, p)               # [rows,  H] f32


def bert_plain_forward(params, input_ids, attention_mask, mention_pos_idx,
                       num_heads):
    B, S = input_ids.shape
    H = params['word_emb'].shape[-1]

    # Embedding lookup (plain-JAX gather glue); LayerNorm in Pallas.
    # TODO(synk): token_type_ids assumed all-zero, as in the reference usage.
    emb = (params['word_emb'][input_ids]
           + params['pos_emb'][jnp.arange(S)][None, :, :]
           + params['type_emb'][0][None, None, :])
    x = pallas_layernorm(emb.astype(jnp.float32).reshape(B * S, H),
                         params['emb_ln_g'], params['emb_ln_b'])

    # Additive attention-mask bias, per batch element: [B, 1, S] (no per-head
    # replication -- the attention BlockSpec indexes it by batch).
    mask = attention_mask.astype(jnp.float32)
    bias = (1.0 - mask)[:, None, :] * jnp.float32(-10000.0)

    for layer in params['layers']:
        x = encoder_layer(x, bias, layer, B, S, num_heads)

    # Mention-token gather (JAX glue), then lane-dense classifier.
    # TODO(synk): gather could be fused into the classifier via
    # PrefetchScalarGridSpec + pl.Element row index_map.
    men_idx = jnp.arange(B) * S + mention_pos_idx
    men_embed = jnp.take(x, men_idx, axis=0)                    # [B, H]
    # nn.Dropout is identity at inference (eval mode).
    logits_pad = pallas_classifier(men_embed, params['cls_w'], params['cls_b'])
    return logits_pad[:, :params['num_labels']]


# --------------------------------- main --------------------------------------

if __name__ == "__main__":
    # Smallest shapes consistent with the kernel layout rules (hidden must be
    # a multiple of 128 for the lane-blocked Q/K/V sections of the fused
    # [rows, 3H] buffer); everything else kept tiny.
    B, S, H, NUM_HEADS, INTERMEDIATE, NUM_LAYERS = 2, 8, 128, 4, 512, 2
    NUM_TOKENS, NUM_LABELS = 100, 5

    key = jax.random.PRNGKey(0)
    k_params, k_ids, k_pos = jax.random.split(key, 3)

    params = init_params(k_params, NUM_TOKENS, NUM_LABELS, H, NUM_LAYERS,
                         INTERMEDIATE, max_pos=S)

    input_ids = jax.random.randint(k_ids, (B, S), 0, NUM_TOKENS,
                                   dtype=jnp.int32)
    attention_mask = jnp.ones((B, S), jnp.int32).at[1, 6:].set(0)
    mention_pos_idx = jax.random.randint(k_pos, (B,), 0, S, dtype=jnp.int32)

    logits = bert_plain_forward(params, input_ids, attention_mask,
                                mention_pos_idx, NUM_HEADS)
    jax.block_until_ready(logits)
    assert logits.shape == (B, NUM_LABELS), logits.shape
    assert bool(jnp.all(jnp.isfinite(logits)))
    print("KERNEL_OK")
</pallas_src>

<mosaic_0001>
module attributes {stable_mosaic.version = 11 : i64} {
  func.func @_probe_kernel(%arg0: i32, %arg1: memref<8x128xf32, #tpu.memory_space<vmem>>, %arg2: memref<8x128xf32, #tpu.memory_space<vmem>>, %arg3: memref<8x128xf32, #tpu.memory_space<vmem>>) attributes {dimension_semantics = [#tpu.dimension_semantics<arbitrary>], iteration_bounds = array<i64: 2>, scalar_prefetch = 0 : i64, scratch_operands = 0 : i64, tpu.core_type = #tpu.core_type<tc>, window_params = [{transform_indices = @transform_0, window_bounds = array<i64: 8, 128>}, {pipeline_mode = #tpu.pipeline_mode<synchronous>, transform_indices = @transform_1, window_bounds = array<i64: 8, 128>}, {transform_indices = @transform_2, window_bounds = array<i64: 8, 128>}]} {
    %c0 = arith.constant 0 : index
    %c0_0 = arith.constant 0 : index
    %0 = vector.load %arg1[%c0, %c0_0] : memref<8x128xf32, #tpu.memory_space<vmem>>, vector<8x128xf32>
    %c0_1 = arith.constant 0 : index
    %c0_2 = arith.constant 0 : index
    %1 = vector.load %arg2[%c0_1, %c0_2] : memref<8x128xf32, #tpu.memory_space<vmem>>, vector<8x128xf32>
    %2 = arith.addf %0, %1 : vector<8x128xf32>
    %c0_3 = arith.constant 0 : index
    %c0_4 = arith.constant 0 : index
    %3 = vector.load %arg3[%c0_3, %c0_4] : memref<8x128xf32, #tpu.memory_space<vmem>>, vector<8x128xf32>
    tpu.vector_store %arg3[%c0_3, %c0_4], %2 {strides = array<i32>} : memref<8x128xf32, #tpu.memory_space<vmem>>, vector<8x128xf32>,
    return
  }
  func.func @transform_0(%arg0: i32) -> (i32, i32) {
    %c0_i32 = arith.constant 0 : i32
    %c0_i32_0 = arith.constant 0 : i32
    return %arg0, %c0_i32 : i32, i32
  }
  func.func @transform_1(%arg0: i32) -> (i32, i32) {
    %c0_i32 = arith.constant 0 : i32
    %c0_i32_0 = arith.constant 0 : i32
    %c0_i32_1 = arith.constant 0 : i32
    return %c0_i32, %c0_i32_0 : i32, i32
  }
  func.func @transform_2(%arg0: i32) -> (i32, i32) {
    %c0_i32 = arith.constant 0 : i32
    %c0_i32_0 = arith.constant 0 : i32
    return %arg0, %c0_i32 : i32, i32
  }
}

module attributes {stable_mosaic.version = 11 : i64} {
  func.func @layernorm_kernel(%arg0: i32, %arg1: memref<16x128xf32, #tpu.memory_space<vmem>>, %arg2: memref<1x128xf32, #tpu.memory_space<vmem>>, %arg3: memref<1x128xf32, #tpu.memory_space<vmem>>, %arg4: memref<16x128xf32, #tpu.memory_space<vmem>>) attributes {dimension_semantics = [#tpu.dimension_semantics<parallel>], iteration_bounds = array<i64: 1>, scalar_prefetch = 0 : i64, scratch_operands = 0 : i64, tpu.core_type = #tpu.core_type<tc>, window_params = [{transform_indices = @transform_0, window_bounds = array<i64: 16, 128>}, {pipeline_mode = #tpu.pipeline_mode<synchronous>, transform_indices = @transform_1, window_bounds = array<i64: 1, 128>}, {pipeline_mode = #tpu.pipeline_mode<synchronous>, transform_indices = @transform_2, window_bounds = array<i64: 1, 128>}, {transform_indices = @transform_3, window_bounds = array<i64: 16, 128>}]} {
    %c0 = arith.constant 0 : index
    %c0_0 = arith.constant 0 : index
    %0 = vector.load %arg1[%c0, %c0_0] : memref<16x128xf32, #tpu.memory_space<vmem>>, vector<16x128xf32>
    %c0_1 = arith.constant 0 : index
    %c0_2 = arith.constant 0 : index
    %1 = vector.load %arg2[%c0_1, %c0_2] : memref<1x128xf32, #tpu.memory_space<vmem>>, vector<1x128xf32>
    %c0_3 = arith.constant 0 : index
    %c0_4 = arith.constant 0 : index
    %2 = vector.load %arg3[%c0_3, %c0_4] : memref<1x128xf32, #tpu.memory_space<vmem>>, vector<1x128xf32>
    %cst = arith.constant dense<0.000000e+00> : vector<16xf32>
    %3 = vector.multi_reduction <add>, %0, %cst [1] : vector<16x128xf32> to vector<16xf32>
    %4 = vector.shape_cast %3 : vector<16xf32> to vector<16x1xf32>
    %cst_5 = arith.constant 1.280000e+02 : f32
    %5 = vector.broadcast %cst_5 : f32 to vector<16x1xf32>
    %6 = arith.divf %4, %5 : vector<16x1xf32>
    %7 = vector.broadcast %6 : vector<16x1xf32> to vector<16x128xf32>
    %8 = arith.subf %0, %7 : vector<16x128xf32>
    %9 = arith.mulf %8, %8 : vector<16x128xf32>
    %cst_6 = arith.constant dense<0.000000e+00> : vector<16xf32>
    %10 = vector.multi_reduction <add>, %9, %cst_6 [1] : vector<16x128xf32> to vector<16xf32>
    %11 = vector.shape_cast %10 : vector<16xf32> to vector<16x1xf32>
    %cst_7 = arith.constant 1.280000e+02 : f32
    %12 = vector.broadcast %cst_7 : f32 to vector<16x1xf32>
    %13 = arith.divf %11, %12 : vector<16x1xf32>
    %14 = vector.broadcast %6 : vector<16x1xf32> to vector<16x128xf32>
    %15 = arith.subf %0, %14 : vector<16x128xf32>
    %cst_8 = arith.constant 9.99999996E-13 : f32
    %16 = vector.broadcast %cst_8 : f32 to vector<16x1xf32>
    %17 = arith.addf %13, %16 : vector<16x1xf32>
    %18 = math.rsqrt %17 : vector<16x1xf32>
    %19 = vector.broadcast %18 : vector<16x1xf32> to vector<16x128xf32>
    %20 = arith.mulf %15, %19 : vector<16x128xf32>
    %21 = vector.broadcast %1 : vector<1x128xf32> to vector<16x128xf32>
    %22 = arith.mulf %20, %21 : vector<16x128xf32>
    %23 = vector.broadcast %2 : vector<1x128xf32> to vector<16x128xf32>
    %24 = arith.addf %22, %23 : vector<16x128xf32>
    %c0_9 = arith.constant 0 : index
    %c0_10 = arith.constant 0 : index
    %25 = vector.load %arg4[%c0_9, %c0_10] : memref<16x128xf32, #tpu.memory_space<vmem>>, vector<16x128xf32>
    tpu.vector_store %arg4[%c0_9, %c0_10], %24 {strides = array<i32>} : memref<16x128xf32, #tpu.memory_space<vmem>>, vector<16x128xf32>,
    return
  }
  func.func @transform_0(%arg0: i32) -> (i32, i32) {
    %c0_i32 = arith.constant 0 : i32
    %c0_i32_0 = arith.constant 0 : i32
    return %arg0, %c0_i32 : i32, i32
  }
  func.func @transform_1(%arg0: i32) -> (i32, i32) {
    %c0_i32 = arith.constant 0 : i32
    %c0_i32_0 = arith.constant 0 : i32
    %c0_i32_1 = arith.constant 0 : i32
    return %c0_i32, %c0_i32_0 : i32, i32
  }
  func.func @transform_2(%arg0: i32) -> (i32, i32) {
    %c0_i32 = arith.constant 0 : i32
    %c0_i32_0 = arith.constant 0 : i32
    %c0_i32_1 = arith.constant 0 : i32
    return %c0_i32, %c0_i32_0 : i32, i32
  }
  func.func @transform_3(%arg0: i32) -> (i32, i32) {
    %c0_i32 = arith.constant 0 : i32
    %c0_i32_0 = arith.constant 0 : i32
    return %arg0, %c0_i32 : i32, i32
  }
}

</mosaic_0001>

<llo_original>
// kernel: tpu_custom_call.1
$region0: #{tpu_custom_call.1}
  #allocation0 [shape = 'u32[]', space=smem, size = 0x4, offset = 0x4, fixed_abs, tag = 'smem constant byte address 0x4 - core index']
  #allocation1 [shape = 'u32[144,128]{1,0:T(1,128)}', space=vmem, size = 0x12000, scoped, tag = 'internal scratch']
  %s0 = inlined_call_operand.hbm [shape: f32[16,128], index: 0, kind: input, shape index: {}]
  %s1 = inlined_call_operand.hbm [shape: f32[8,128], index: 1, kind: input, shape index: {}]
  %s2 = inlined_call_operand.hbm [shape: f32[16,128], index: 2, kind: output, shape index: {}]
  %s3 = sld [smem:[#allocation0]]
  $region49: #{tpu_custom_call.1} parent=0
    _
  %s5 = ssub.s32 1, %s3
  %s6 = scalar_select 0, %s5, %s3
  $region1: #{tpu_custom_call.1} parent=0
    #allocation2 [shape = 'u8[8192]{0}', space=vmem, size = 0x2000, scoped, tag = 'input window, operand 0']
    #allocation3 [shape = 's32[2]{0}', space=sflag, size = 0x8, scoped, tag = 'scoped memory for tpu_custom_call.1']
    #allocation4 [shape = 's32[2]{0}', space=sflag, size = 0x8, scoped, tag = 'scoped memory for tpu_custom_call.1']
    #allocation5 [shape = 'u8[4096]{0}', space=vmem, size = 0x1000, scoped, tag = 'input window, operand 1, single buffered']
    #allocation6 [shape = 's32[1]{0}', space=sflag, size = 0x4, scoped, tag = 'scoped memory for tpu_custom_call.1']
    #allocation7 [shape = 'u8[8192]{0}', space=vmem, size = 0x2000, scoped, tag = 'output window, operand 0']
    %7 = vsyncpa [#allocation3], 0
    %s8 = scalar_lea.sflag [#allocation3], 1
    %9 = vsyncpa %s8, 0
    %10 = vsyncpa [#allocation6], 0
    %11 = vsyncpa [#allocation4], 0
    %s12 = scalar_lea.sflag [#allocation4], 1
    %13 = vsyncpa %s12, 0
    loop: start=0, step=1, limit=4
    $region2: #{tpu_custom_call.1} parent=1 // loop_pre_header
      _
    $region3: #{tpu_custom_call.1} parent=1 // loop_header
      %s15 = sphi 0, %s19
      %p16 = scmp.ge.s32.totalorder %s15, 4
      %s25 = sphi 0, %s27
      %s28 = sphi 0, %s25
      %s29 = sphi 0, %s28
      %s45 = sphi 0, %s29
      %s49 = sphi 0, %s49
      %s51 = sphi 0, %s49
      %s52 = sphi 0, %s51
      %s66 = sphi 0, %s52
      %s72 = sphi 0, %s74
      %s75 = sphi 0, %s72
      %s76 = sphi 0, %s75
      %s92 = sphi 0, %s76
    $region4: #{tpu_custom_call.1} parent=1 // loop_header_branch
      %18 = sbr.rel (%p16) target = $region8
    $region5: #{tpu_custom_call.1} parent=1 // loop_body
      %s20 = ssub.s32 %s15, 1
      %s21 = ssub.s32 %s15, 2
      %s22 = sadd.s32 %s15, 1
      %s23 = ssub.s32 %s15, %s22
      %p24 = scmp.eq.s32.totalorder %s23, 0
      %s26 = sadd.s32 %s25, 1
      %s27 = scalar_select %p24, %s25, %s26
      %p30 = pneg %p24
      %p31 = scmp.eq.s32.totalorder %s15, 1
      %p32 = por %p30, %p31
      %p33 = scmp.ne.s32.totalorder %s25, %s28
      %p34 = scmp.eq.s32.totalorder %s15, 0
      %p35 = por %p33, %p34
      %p36 = scmp.ne.s32.totalorder %s25, %s28
      %p37 = scmp.eq.s32.totalorder %s20, 1
      %p38 = por %p36, %p37
      %p39 = scmp.ne.s32.totalorder %s28, %s29
      %p40 = scmp.eq.s32.totalorder %s20, 0
      %p41 = por %p39, %p40
      %p42 = scmp.ne.s32.totalorder %s28, %s29
      %p43 = scmp.eq.s32.totalorder %s21, 1
      %p44 = por %p42, %p43
      %p46 = scmp.ne.s32.totalorder %s29, %s45
      %p47 = scmp.eq.s32.totalorder %s21, 0
      %p48 = por %p46, %p47
      %s50 = sadd.s32 %s49, 1
      %p53 = scmp.eq.s32.totalorder %s15, 1
      %p54 = scmp.ne.s32.totalorder %s49, %s51
      %p55 = scmp.eq.s32.totalorder %s15, 0
      %p56 = por %p54, %p55
      %p57 = scmp.ne.s32.totalorder %s49, %s51
      %p58 = scmp.eq.s32.totalorder %s20, 1
      %p59 = por %p57, %p58
      %p60 = scmp.ne.s32.totalorder %s51, %s52
      %p61 = scmp.eq.s32.totalorder %s20, 0
      %p62 = por %p60, %p61
      %p63 = scmp.ne.s32.totalorder %s51, %s52
      %p64 = scmp.eq.s32.totalorder %s21, 1
      %p65 = por %p63, %p64
      %p67 = scmp.ne.s32.totalorder %s52, %s66
      %p68 = scmp.eq.s32.totalorder %s21, 0
      %p69 = por %p67, %p68
      %s70 = ssub.s32 %s15, %s22
      %p71 = scmp.eq.s32.totalorder %s70, 0
      %s73 = sadd.s32 %s72, 1
      %s74 = scalar_select %p71, %s72, %s73
      %p77 = pneg %p71
      %p78 = scmp.eq.s32.totalorder %s15, 1
      %p79 = por %p77, %p78
      %p80 = scmp.ne.s32.totalorder %s72, %s75
      %p81 = scmp.eq.s32.totalorder %s15, 0
      %p82 = por %p80, %p81
      %p83 = scmp.ne.s32.totalorder %s72, %s75
      %p84 = scmp.eq.s32.totalorder %s20, 1
      %p85 = por %p83, %p84
      %p86 = scmp.ne.s32.totalorder %s75, %s76
      %p87 = scmp.eq.s32.totalorder %s20, 0
      %p88 = por %p86, %p87
      %p89 = scmp.ne.s32.totalorder %s75, %s76
      %p90 = scmp.eq.s32.totalorder %s21, 1
      %p91 = por %p89, %p90
      %p93 = scmp.ne.s32.totalorder %s76, %s92
      %p94 = scmp.eq.s32.totalorder %s21, 0
      %p95 = por %p93, %p94
      %p96 = scmp.le.s32.totalorder 1, %s15
      %p97 = scmp.lt.s32.totalorder %s15, 3
      %p98 = pnand %p96, %p97
      %p99 = pneg %p98
      // Predicated region
      $region9: #{tpu_custom_call.1} parent=5 // pred_check
        _
      $region10: #{tpu_custom_call.1} parent=5 // pred_check_branch
        %101 = sbr.rel (%p98) target = $region12
      $region11: #{tpu_custom_call.1} parent=5 // pred_region
        %s102 = ssub.s32 %s15, 1
        // Predicated region
        $region13: #{tpu_custom_call.1} parent=11 // pred_check
          %p103 = pneg %p62
        $region14: #{tpu_custom_call.1} parent=11 // pred_check_branch
          %105 = sbr.rel (%p103) target = $region16
        $region15: #{tpu_custom_call.1} parent=11 // pred_region
          %s107 = ssub.s32 128, 128
          %108 = vsyncadd [#allocation6], %s107
          %s110 = sshll.u32 [#allocation5], 4
          %s111 = int_to_ptr.vmem [resolvable:$true] %s110
          %113 = dma.hbm_to_vmem [thread:$0]  %s1, 128, %s111, [#allocation6]
        $region16: #{tpu_custom_call.1} parent=11 // pred_fallthru
          _
      $region12: #{tpu_custom_call.1} parent=5 // pred_fallthru
        _
      %p114 = scmp.lt.s32.totalorder %s15, 2
      // Predicated region
      $region17: #{tpu_custom_call.1} parent=5 // pred_check
        %p115 = pneg %p114
      $region18: #{tpu_custom_call.1} parent=5 // pred_check_branch
        %117 = sbr.rel (%p115) target = $region20
      $region19: #{tpu_custom_call.1} parent=5 // pred_region
        // Predicated region
        $region21: #{tpu_custom_call.1} parent=19 // pred_check
          %p118 = pneg %p35
        $region22: #{tpu_custom_call.1} parent=19 // pred_check_branch
          %120 = sbr.rel (%p118) target = $region24
        $region23: #{tpu_custom_call.1} parent=19 // pred_region
          %s121 = sand.u32 %s25, 1
          %s122 = scalar_lea.sflag [#allocation3], %s121
          %s123 = sand.u32 %s25, 1
          %s124 = smul.addr %s123, 8
          %s125 = scalar_lea.vmem [#allocation2], %s124
          %s127 = ssub.s32 128, 128
          %128 = vsyncadd %s122, %s127
          %s129 = smul.addr %s15, 128
          %s130 = scalar_lea.hbm %s0, %s129
          %s132 = sshll.u32 %s125, 4
          %s133 = int_to_ptr.vmem [resolvable:$true] %s132
          %135 = dma.hbm_to_vmem [thread:$0]  %s130, 128, %s133, %s122
        $region24: #{tpu_custom_call.1} parent=19 // pred_fallthru
          _
      $region20: #{tpu_custom_call.1} parent=5 // pred_fallthru
        _
      %p136 = scmp.le.s32.totalorder 1, %s15
      %p137 = scmp.lt.s32.totalorder %s15, 3
      %p138 = pnand %p136, %p137
      %p139 = pneg %p138
      // Predicated region
      $region25: #{tpu_custom_call.1} parent=5 // pred_check
        _
      $region26: #{tpu_custom_call.1} parent=5 // pred_check_branch
        %141 = sbr.rel (%p138) target = $region28
      $region27: #{tpu_custom_call.1} parent=5 // pred_region
        %s142 = ssub.s32 %s15, 1
        %s143 = sand.u32 %s28, 1
        %s144 = scalar_lea.sflag [#allocation3], %s143
        %s145 = sand.u32 %s28, 1
        %s146 = smul.addr %s145, 8
        %s147 = scalar_lea.vmem [#allocation2], %s146
        // Predicated region
        $region29: #{tpu_custom_call.1} parent=27 // pred_check
          %p148 = pneg %p41
        $region30: #{tpu_custom_call.1} parent=27 // pred_check_branch
          %150 = sbr.rel (%p148) target = $region32
        $region31: #{tpu_custom_call.1} parent=27 // pred_region
          %151 = dma.done %s144, 128
        $region32: #{tpu_custom_call.1} parent=27 // pred_fallthru
          _
        // Predicated region
        $region33: #{tpu_custom_call.1} parent=27 // pred_check
          %p152 = pneg %p62
        $region34: #{tpu_custom_call.1} parent=27 // pred_check_branch
          %154 = sbr.rel (%p152) target = $region36
        $region35: #{tpu_custom_call.1} parent=27 // pred_region
          %155 = dma.done [#allocation6], 128
        $region36: #{tpu_custom_call.1} parent=27 // pred_fallthru
          _
        %s156 = sand.u32 %s28, 1
        %s157 = scalar_lea.sflag [#allocation3], %s156
        %s158 = sand.u32 %s28, 1
        %s159 = smul.addr %s158, 8
        %s160 = scalar_lea.vmem [#allocation2], %s159
        %p161 = pneg %p41
        %p162 = pneg %p38
        %p163 = pneg %p62
        %p164 = pneg %p59
        %p165 = pneg %p88
        %p166 = pneg %p85
        %s167 = sand.u32 %s75, 1
        %s168 = scalar_lea.sflag [#allocation4], %s167
        %s169 = sand.u32 %s75, 1
        %s170 = smul.addr %s169, 8
        %s171 = scalar_lea.vmem [#allocation7], %s170
        %v172 = vld [vmem:[%s147] sm:$0xff]
        %v173 = vld [vmem:[#allocation5] sm:$0xff]
        %v174 = vadd.f32 %v172, %v173
        %175 = vst [vmem:[%s171] sm:$0xff] %v174
        %s176 = sand.u32 %s75, 1
        %s177 = scalar_lea.sflag [#allocation4], %s176
        %s178 = sand.u32 %s75, 1
        %s179 = smul.addr %s178, 8
        %s180 = scalar_lea.vmem [#allocation7], %s179
        // Predicated region
        $region37: #{tpu_custom_call.1} parent=27 // pred_check
          %p181 = pneg %p85
        $region38: #{tpu_custom_call.1} parent=27 // pred_check_branch
          %183 = sbr.rel (%p181) target = $region40
        $region39: #{tpu_custom_call.1} parent=27 // pred_region
          %s185 = ssub.s32 128, 128
          %186 = vsyncadd %s177, %s185
          %s187 = smul.addr %s20, 128
          %s188 = scalar_lea.hbm %s2, %s187
          %s190 = sshll.u32 %s180, 4
          %s191 = int_to_ptr.vmem [resolvable:$true] %s190
          %193 = dma.vmem_to_hbm [thread:$0]  %s191, 128, %s188, %s177
        $region40: #{tpu_custom_call.1} parent=27 // pred_fallthru
          _
      $region28: #{tpu_custom_call.1} parent=5 // pred_fallthru
        _
      %p194 = scmp.le.s32.totalorder 2, %s15
      // Predicated region
      $region41: #{tpu_custom_call.1} parent=5 // pred_check
        %p195 = pneg %p194
      $region42: #{tpu_custom_call.1} parent=5 // pred_check_branch
        %197 = sbr.rel (%p195) target = $region44
      $region43: #{tpu_custom_call.1} parent=5 // pred_region
        %s198 = ssub.s32 %s15, 2
        // Predicated region
        $region45: #{tpu_custom_call.1} parent=43 // pred_check
          %p199 = pneg %p91
        $region46: #{tpu_custom_call.1} parent=43 // pred_check_branch
          %201 = sbr.rel (%p199) target = $region48
        $region47: #{tpu_custom_call.1} parent=43 // pred_region
          %s202 = sand.u32 %s76, 1
          %s203 = scalar_lea.sflag [#allocation4], %s202
          %s204 = sand.u32 %s76, 1
          %s205 = smul.addr %s204, 8
          %s206 = scalar_lea.vmem [#allocation7], %s205
          %207 = dma.done %s203, 128
        $region48: #{tpu_custom_call.1} parent=43 // pred_fallthru
          _
      $region44: #{tpu_custom_call.1} parent=5 // pred_fallthru
        _
    $region6: #{tpu_custom_call.1} parent=1 // loop_footer
      %s19 = sadd.s32 1, %s15
    $region7: #{tpu_custom_call.1} parent=1 // loop_footer_branch
      %14 = sbr.rel target = $region3
    $region8: #{tpu_custom_call.1} parent=1 // loop_exit
      _
    %208 = vsyncpa [#allocation3], 1
    %s209 = scalar_lea.sflag [#allocation3], 1
    %210 = vsyncpa %s209, 1
    %211 = vsyncpa [#allocation6], 1
    %212 = vsyncpa [#allocation4], 1
    %s213 = scalar_lea.sflag [#allocation4], 1
    %214 = vsyncpa %s213, 1

// kernel: tpu_custom_call.1
$region0: #{tpu_custom_call.1}
  #allocation0 [shape = 'u32[]', space=smem, size = 0x4, offset = 0x4, fixed_abs, tag = 'smem constant byte address 0x4 - core index']
  #allocation1 [shape = 'u32[144,128]{1,0:T(1,128)}', space=vmem, size = 0x12000, scoped, tag = 'internal scratch']
  %s0 = inlined_call_operand.hbm [shape: f32[16,128], index: 0, kind: input, shape index: {}]
  %s1 = inlined_call_operand.hbm [shape: f32[1,128], index: 1, kind: input, shape index: {}]
  %s2 = inlined_call_operand.hbm [shape: f32[1,128], index: 2, kind: input, shape index: {}]
  %s3 = inlined_call_operand.hbm [shape: f32[16,128], index: 3, kind: output, shape index: {}]
  %s4 = sld [smem:[#allocation0]]
  $region34: #{tpu_custom_call.1} parent=0
    _
  %s6 = ssub.s32 1, %s4
  %s7 = scalar_select 0, %s6, %s4
  $region1: #{tpu_custom_call.1} parent=0
    #allocation2 [shape = 'u8[8192]{0}', space=vmem, size = 0x2000, scoped, tag = 'input window, operand 0, single buffered']
    #allocation3 [shape = 's32[1]{0}', space=sflag, size = 0x4, scoped, tag = 'scoped memory for tpu_custom_call.1']
    #allocation4 [shape = 's32[1]{0}', space=sflag, size = 0x4, scoped, tag = 'scoped memory for tpu_custom_call.1']
    #allocation5 [shape = 'u8[512]{0}', space=vmem, size = 0x400, scoped, tag = 'input window, operand 1, single buffered']
    #allocation6 [shape = 's32[1]{0}', space=sflag, size = 0x4, scoped, tag = 'scoped memory for tpu_custom_call.1']
    #allocation7 [shape = 'u8[512]{0}', space=vmem, size = 0x400, scoped, tag = 'input window, operand 2, single buffered']
    #allocation8 [shape = 'u8[8192]{0}', space=vmem, size = 0x2000, scoped, tag = 'output window, operand 0, single buffered']
    %8 = vsyncpa [#allocation3], 0
    %9 = vsyncpa [#allocation6], 0
    %10 = vsyncpa [#allocation4], 0
    // Predicated region
    $region2: #{tpu_custom_call.1} parent=1 // pred_check
      _
    $region3: #{tpu_custom_call.1} parent=1 // pred_check_branch
      %12 = sbr.rel (0) target = $region5
    $region4: #{tpu_custom_call.1} parent=1 // pred_region
      %s14 = ssub.s32 256, 256
      %15 = vsyncadd [#allocation3], %s14
      %s16 = sshll.u32 [#allocation2], 4
      %s17 = int_to_ptr.vmem [resolvable:$true] %s16
      %22 = dma.hbm_to_vmem [thread:$0]  %s0, 256, %s17, [#allocation3], 128, 128, 8
    $region5: #{tpu_custom_call.1} parent=1 // pred_fallthru
      _
    // Predicated region
    $region6: #{tpu_custom_call.1} parent=1 // pred_check
      _
    $region7: #{tpu_custom_call.1} parent=1 // pred_check_branch
      %24 = sbr.rel (0) target = $region9
    $region8: #{tpu_custom_call.1} parent=1 // pred_region
      %s26 = ssub.s32 16, 16
      %27 = vsyncadd [#allocation6], %s26
      %s29 = sshll.u32 [#allocation5], 4
      %s30 = int_to_ptr.vmem [resolvable:$true] %s29
      %32 = dma.hbm_to_vmem [thread:$0]  %s1, 16, %s30, [#allocation6]
    $region9: #{tpu_custom_call.1} parent=1 // pred_fallthru
      _
    // Predicated region
    $region10: #{tpu_custom_call.1} parent=1 // pred_check
      _
    $region11: #{tpu_custom_call.1} parent=1 // pred_check_branch
      %34 = sbr.rel (0) target = $region13
    $region12: #{tpu_custom_call.1} parent=1 // pred_region
      %s36 = ssub.s32 16, 16
      %37 = vsyncadd [#allocation6], %s36
      %s39 = sshll.u32 [#allocation7], 4
      %s40 = int_to_ptr.vmem [resolvable:$true] %s39
      %42 = dma.hbm_to_vmem [thread:$0]  %s2, 16, %s40, [#allocation6]
    $region13: #{tpu_custom_call.1} parent=1 // pred_fallthru
      _
    // Predicated region
    $region14: #{tpu_custom_call.1} parent=1 // pred_check
      _
    $region15: #{tpu_custom_call.1} parent=1 // pred_check_branch
      %44 = sbr.rel (0) target = $region17
    $region16: #{tpu_custom_call.1} parent=1 // pred_region
      %45 = dma.done [#allocation3], 256
    $region17: #{tpu_custom_call.1} parent=1 // pred_fallthru
      _
    // Predicated region
    $region18: #{tpu_custom_call.1} parent=1 // pred_check
      _
    $region19: #{tpu_custom_call.1} parent=1 // pred_check_branch
      %47 = sbr.rel (0) target = $region21
    $region20: #{tpu_custom_call.1} parent=1 // pred_region
      %48 = dma.done [#allocation6], 16
    $region21: #{tpu_custom_call.1} parent=1 // pred_fallthru
      _
    // Predicated region
    $region22: #{tpu_custom_call.1} parent=1 // pred_check
      _
    $region23: #{tpu_custom_call.1} parent=1 // pred_check_branch
      %50 = sbr.rel (0) target = $region25
    $region24: #{tpu_custom_call.1} parent=1 // pred_region
      %51 = dma.done [#allocation6], 16
    $region25: #{tpu_custom_call.1} parent=1 // pred_fallthru
      _
    %v52 = vld [vmem:[#allocation2] sm:$0xff]
    %v53 = vld [vmem:[#allocation2 + $0x8] sm:$0xff]
    %v54 = vld [vmem:[#allocation5] sm:$0x1]
    %v55 = vld [vmem:[#allocation7] sm:$0x1]
    %56 = vadd.xlane.f32.xlu0 %v52
    %v57 = vpop.xlane.xlu0 %56
    %58 = vadd.xlane.f32.xlu0 %v53
    %v59 = vpop.xlane.xlu0 %58
    %v60 = vrcp.pop 128.0
    %v61 = vmul.f32 %v57, %v60
    %v62 = vmul.f32 %v59, %v60
    %v63 = vsub.f32 %v52, %v61
    %v64 = vsub.f32 %v53, %v62
    %v65 = vmul.f32 %v63, %v63
    %v66 = vmul.f32 %v64, %v64
    %67 = vadd.xlane.f32.xlu0 %v65
    %v68 = vpop.xlane.xlu0 %67
    %69 = vadd.xlane.f32.xlu0 %v66
    %v70 = vpop.xlane.xlu0 %69
    %v71 = vmul.f32 %v68, %v60
    %v72 = vmul.f32 %v70, %v60
    %v73 = vadd.f32 %v71, 1e-12
    %v74 = vadd.f32 %v72, 1e-12
    %v75 = vrsqrt.pop %v73
    %v76 = vrsqrt.pop %v74
    %v77 = vmul.f32 %v63, %v75
    %v78 = vmul.f32 %v64, %v76
    %v80 = vlaneseq
    %v81 = vshrl.u32 %v80, 7
    %v82 = vsub.s32 0, %v81
    %v83 = vrot.slane %v54, %v82
    %v85 = vmul.f32 %v77, %v83
    %v86 = vmul.f32 %v78, %v83
    %v88 = vlaneseq
    %v89 = vshrl.u32 %v88, 7
    %v90 = vsub.s32 0, %v89
    %v91 = vrot.slane %v55, %v90
    %v93 = vadd.f32 %v85, %v91
    %v94 = vadd.f32 %v86, %v91
    %95 = vst [vmem:[#allocation8] sm:$0xff] %v93
    %96 = vst [vmem:[#allocation8 + $0x8] sm:$0xff] %v94
    // Predicated region
    $region26: #{tpu_custom_call.1} parent=1 // pred_check
      _
    $region27: #{tpu_custom_call.1} parent=1 // pred_check_branch
      %98 = sbr.rel (0) target = $region29
    $region28: #{tpu_custom_call.1} parent=1 // pred_region
      %s100 = ssub.s32 256, 256
      %101 = vsyncadd [#allocation4], %s100
      %s102 = sshll.u32 [#allocation8], 4
      %s103 = int_to_ptr.vmem [resolvable:$true] %s102
      %108 = dma.vmem_to_hbm [thread:$0]  %s103, 256, %s3, [#allocation4], 128, 128, 8
    $region29: #{tpu_custom_call.1} parent=1 // pred_fallthru
      _
    // Predicated region
    $region30: #{tpu_custom_call.1} parent=1 // pred_check
      _
    $region31: #{tpu_custom_call.1} parent=1 // pred_check_branch
      %110 = sbr.rel (0) target = $region33
    $region32: #{tpu_custom_call.1} parent=1 // pred_region
      %111 = dma.done [#allocation4], 256
    $region33: #{tpu_custom_call.1} parent=1 // pred_fallthru
      _
    %112 = vsyncpa [#allocation3], 1
    %113 = vsyncpa [#allocation6], 1
    %114 = vsyncpa [#allocation4], 1

</llo_original>
